<compile_context>
chip_gen: v6e
topology: v6e:2x2x1
jax: 0.10.0
libtpu: 0.0.40
codegen_flags: <defaults>
</compile_context>

<pallas_src>
import functools

import jax
import jax.numpy as jnp
from jax import lax
from jax.experimental import pallas as pl
from jax.experimental.pallas import tpu as pltpu

EPS = 1e-6  # matches nn.CosineSimilarity(dim=-1, eps=1e-06) in the module


def _contrastive_loss_kernel(a_ref, p_ref, n_ref, out_ref, *,
                             batch, tile_rows, margin):
    t = pl.program_id(0)  # batch tile (reduction axis)

    a = a_ref[...].astype(jnp.float32)
    p = p_ref[...].astype(jnp.float32)
    n = n_ref[...].astype(jnp.float32)

    # Shared ||a||^2 computed once and reused by both cosine similarities.
    na2 = jnp.sum(a * a, axis=-1, keepdims=True)
    np2 = jnp.sum(p * p, axis=-1, keepdims=True)
    nn2 = jnp.sum(n * n, axis=-1, keepdims=True)
    dot_p = jnp.sum(a * p, axis=-1, keepdims=True)
    dot_n = jnp.sum(a * n, axis=-1, keepdims=True)

    # ATen cosine_similarity: dot / sqrt(clamp(||x||^2 * ||y||^2, eps^2)).
    # rsqrt lands on the otherwise-idle EUP slot.
    cos_p = dot_p * lax.rsqrt(jnp.maximum(na2 * np2, EPS * EPS))
    cos_n = dot_n * lax.rsqrt(jnp.maximum(na2 * nn2, EPS * EPS))

    hinge = jnp.maximum(margin - cos_p, 0.0)
    per_row = cos_n * cos_n + hinge * hinge            # (tile_rows, 1)

    # Mask rows past the end of the batch (ragged last tile). Select semantics
    # guarantee garbage/NaN in the unselected branch never propagates.
    rows_valid = batch - t * tile_rows
    row_ids = lax.broadcasted_iota(jnp.int32, (tile_rows, 1), 0)
    per_row = jnp.where(row_ids < rows_valid, per_row, 0.0)

    partial = jnp.sum(per_row, axis=0, keepdims=True)  # (1, 1)

    @pl.when(t == 0)
    def _():
        out_ref[...] = jnp.zeros_like(out_ref)

    out_ref[...] += partial


def _pick_tile_rows(batch, dim, itemsize, target_block_bytes=4 << 20):
    """Byte-targeted row tile: ~4 MiB per input block, rounded to the sublane
    multiple, so the ~0.35 us per-grid-step overhead stays negligible while
    3 inputs x 2 pipeline buffers (~24 MiB) fit every generation's VMEM."""
    sublane = {4: 8, 2: 16, 1: 32}.get(itemsize, 8)
    rows = max(sublane, target_block_bytes // (dim * itemsize))
    rows = max(sublane, (rows // sublane) * sublane)
    if batch <= rows:
        return batch  # full-batch block is always legal
    return rows


def contrastive_loss(anchor, positive, negative, margin=1.0, tile_rows=None):
    """anchor/positive/negative: (B, D) arrays (f32 or bf16). Returns scalar f32 loss."""
    assert anchor.shape == positive.shape == negative.shape
    batch, dim = anchor.shape
    itemsize = jnp.dtype(anchor.dtype).itemsize
    tb = tile_rows if tile_rows is not None else _pick_tile_rows(batch, dim, itemsize)
    num_tiles = pl.cdiv(batch, tb)

    in_spec = pl.BlockSpec((tb, dim), lambda t: (t, 0))
    # Resident scalar accumulator block; block shape == full array shape (legal).
    out_spec = pl.BlockSpec((1, 1), lambda t: (0, 0))

    kernel = functools.partial(
        _contrastive_loss_kernel,
        batch=batch, tile_rows=tb, margin=float(margin))

    # 3 inputs x 2 pipeline buffers + headroom; capped at 56 MiB (v7x has only
    # 64 MiB physical VMEM per TC; v5e/v6e have plenty of slack at this size).
    block_bytes = tb * dim * itemsize
    vmem_limit = int(min(max(3 * 2 * block_bytes + (2 << 20), 16 << 20), 56 << 20))

    cost = pl.CostEstimate(
        flops=int(10 * batch * dim),
        transcendentals=int(2 * batch),
        bytes_accessed=int(3 * batch * dim * itemsize + 4),
    )

    total = pl.pallas_call(
        kernel,
        out_shape=jax.ShapeDtypeStruct((1, 1), jnp.float32),
        grid_spec=pltpu.PrefetchScalarGridSpec(
            num_scalar_prefetch=0,
            grid=(num_tiles,),
            in_specs=[in_spec, in_spec, in_spec],
            out_specs=out_spec,
        ),
        compiler_params=pltpu.CompilerParams(
            dimension_semantics=("arbitrary",),
            vmem_limit_bytes=vmem_limit,
        ),
        cost_estimate=cost,
    )(anchor, positive, negative)

    # sum-then-divide: the only correct way to fold the mean across grid steps.
    return total[0, 0] / batch


def contrastive_loss_ref(anchor, positive, negative, margin=1.0):
    """Pure-JAX reference mirroring the PyTorch module (ATen eps semantics)."""
    a = anchor.astype(jnp.float32)
    p = positive.astype(jnp.float32)
    n = negative.astype(jnp.float32)

    def cos_sim(x, y):
        dot = jnp.sum(x * y, axis=-1)
        denom = jnp.sqrt(jnp.maximum(
            jnp.sum(x * x, axis=-1) * jnp.sum(y * y, axis=-1), EPS * EPS))
        return dot / denom

    dp = cos_sim(a, p)
    dn = cos_sim(a, n)
    return jnp.mean(dn ** 2) + jnp.mean(jnp.maximum(margin - dp, 0.0) ** 2)


if __name__ == "__main__":
    # Small embedding shapes: batch=8, hidden=128 (lane-aligned, single tile).
    B, D = 8, 128
    ka, kp, kn = jax.random.split(jax.random.PRNGKey(0), 3)
    anchor = jax.random.normal(ka, (B, D), dtype=jnp.float32)
    positive = jax.random.normal(kp, (B, D), dtype=jnp.float32)
    negative = jax.random.normal(kn, (B, D), dtype=jnp.float32)

    loss = jax.block_until_ready(contrastive_loss(anchor, positive, negative))
    ref = jax.block_until_ready(contrastive_loss_ref(anchor, positive, negative))
    assert jnp.allclose(loss, ref, rtol=1e-5, atol=1e-5), (loss, ref)

    # Exercise the tiled / ragged-batch path (B not a tile multiple).
    B2 = 20
    k2a, k2p, k2n = jax.random.split(jax.random.PRNGKey(1), 3)
    a2 = jax.random.normal(k2a, (B2, D), dtype=jnp.float32)
    p2 = jax.random.normal(k2p, (B2, D), dtype=jnp.float32)
    n2 = jax.random.normal(k2n, (B2, D), dtype=jnp.float32)
    loss2 = jax.block_until_ready(contrastive_loss(a2, p2, n2, tile_rows=8))
    ref2 = jax.block_until_ready(contrastive_loss_ref(a2, p2, n2))
    assert jnp.allclose(loss2, ref2, rtol=1e-5, atol=1e-5), (loss2, ref2)

    print("KERNEL_OK")
</pallas_src>

<mosaic_0001>
module attributes {stable_mosaic.version = 11 : i64} {
  func.func @_contrastive_loss_kernel(%arg0: i32, %arg1: memref<8x128xf32, #tpu.memory_space<vmem>>, %arg2: memref<8x128xf32, #tpu.memory_space<vmem>>, %arg3: memref<8x128xf32, #tpu.memory_space<vmem>>, %arg4: memref<1x1xf32, #tpu.memory_space<vmem>>) attributes {dimension_semantics = [#tpu.dimension_semantics<arbitrary>], iteration_bounds = array<i64: 1>, scalar_prefetch = 0 : i64, scratch_operands = 0 : i64, tpu.core_type = #tpu.core_type<tc>, window_params = [{transform_indices = @transform_0, window_bounds = array<i64: 8, 128>}, {transform_indices = @transform_1, window_bounds = array<i64: 8, 128>}, {transform_indices = @transform_2, window_bounds = array<i64: 8, 128>}, {pipeline_mode = #tpu.pipeline_mode<synchronous>, transform_indices = @transform_3, window_bounds = array<i64: 1, 1>}]} {
    %c0 = arith.constant 0 : index
    %c0_0 = arith.constant 0 : index
    %0 = vector.load %arg1[%c0, %c0_0] : memref<8x128xf32, #tpu.memory_space<vmem>>, vector<8x128xf32>
    %c0_1 = arith.constant 0 : index
    %c0_2 = arith.constant 0 : index
    %1 = vector.load %arg2[%c0_1, %c0_2] : memref<8x128xf32, #tpu.memory_space<vmem>>, vector<8x128xf32>
    %c0_3 = arith.constant 0 : index
    %c0_4 = arith.constant 0 : index
    %2 = vector.load %arg3[%c0_3, %c0_4] : memref<8x128xf32, #tpu.memory_space<vmem>>, vector<8x128xf32>
    %3 = arith.mulf %0, %0 : vector<8x128xf32>
    %cst = arith.constant dense<0.000000e+00> : vector<8xf32>
    %4 = vector.multi_reduction <add>, %3, %cst [1] : vector<8x128xf32> to vector<8xf32>
    %5 = vector.shape_cast %4 : vector<8xf32> to vector<8x1xf32>
    %6 = arith.mulf %1, %1 : vector<8x128xf32>
    %cst_5 = arith.constant dense<0.000000e+00> : vector<8xf32>
    %7 = vector.multi_reduction <add>, %6, %cst_5 [1] : vector<8x128xf32> to vector<8xf32>
    %8 = vector.shape_cast %7 : vector<8xf32> to vector<8x1xf32>
    %9 = arith.mulf %2, %2 : vector<8x128xf32>
    %cst_6 = arith.constant dense<0.000000e+00> : vector<8xf32>
    %10 = vector.multi_reduction <add>, %9, %cst_6 [1] : vector<8x128xf32> to vector<8xf32>
    %11 = vector.shape_cast %10 : vector<8xf32> to vector<8x1xf32>
    %12 = arith.mulf %0, %1 : vector<8x128xf32>
    %cst_7 = arith.constant dense<0.000000e+00> : vector<8xf32>
    %13 = vector.multi_reduction <add>, %12, %cst_7 [1] : vector<8x128xf32> to vector<8xf32>
    %14 = vector.shape_cast %13 : vector<8xf32> to vector<8x1xf32>
    %15 = arith.mulf %0, %2 : vector<8x128xf32>
    %cst_8 = arith.constant dense<0.000000e+00> : vector<8xf32>
    %16 = vector.multi_reduction <add>, %15, %cst_8 [1] : vector<8x128xf32> to vector<8xf32>
    %17 = vector.shape_cast %16 : vector<8xf32> to vector<8x1xf32>
    %18 = arith.mulf %5, %8 : vector<8x1xf32>
    %cst_9 = arith.constant 9.99999996E-13 : f32
    %19 = vector.broadcast %cst_9 : f32 to vector<8x1xf32>
    %20 = arith.maximumf %18, %19 : vector<8x1xf32>
    %21 = math.rsqrt %20 : vector<8x1xf32>
    %22 = arith.mulf %14, %21 : vector<8x1xf32>
    %23 = arith.mulf %5, %11 : vector<8x1xf32>
    %cst_10 = arith.constant 9.99999996E-13 : f32
    %24 = vector.broadcast %cst_10 : f32 to vector<8x1xf32>
    %25 = arith.maximumf %23, %24 : vector<8x1xf32>
    %26 = math.rsqrt %25 : vector<8x1xf32>
    %27 = arith.mulf %17, %26 : vector<8x1xf32>
    %cst_11 = arith.constant 1.000000e+00 : f32
    %28 = vector.broadcast %cst_11 : f32 to vector<8x1xf32>
    %29 = arith.subf %28, %22 : vector<8x1xf32>
    %cst_12 = arith.constant 0.000000e+00 : f32
    %30 = vector.broadcast %cst_12 : f32 to vector<8x1xf32>
    %31 = arith.maximumf %29, %30 : vector<8x1xf32>
    %32 = arith.mulf %27, %27 : vector<8x1xf32>
    %33 = arith.mulf %31, %31 : vector<8x1xf32>
    %34 = arith.addf %32, %33 : vector<8x1xf32>
    %c8_i32 = arith.constant 8 : i32
    %35 = arith.muli %arg0, %c8_i32 : i32
    %c8_i32_13 = arith.constant 8 : i32
    %36 = arith.subi %c8_i32_13, %35 : i32
    %37 = tpu.iota {dimensions = array<i32: 0>} : vector<8x1xi32>
    %38 = vector.broadcast %36 : i32 to vector<8x1xi32>
    %39 = arith.cmpi slt, %37, %38 : vector<8x1xi32>
    %cst_14 = arith.constant 0.000000e+00 : f32
    %40 = vector.broadcast %cst_14 : f32 to vector<8x1xf32>
    %41 = arith.select %39, %34, %40 : vector<8x1xi1>, vector<8x1xf32>
    %cst_15 = arith.constant dense<0.000000e+00> : vector<1xf32>
    %42 = vector.multi_reduction <add>, %41, %cst_15 [0] : vector<8x1xf32> to vector<1xf32>
    %43 = vector.shape_cast %42 : vector<1xf32> to vector<1x1xf32>
    %c0_i32 = arith.constant 0 : i32
    %44 = arith.cmpi eq, %arg0, %c0_i32 : i32
    %45 = arith.extui %44 : i1 to i32
    %c0_i32_16 = arith.constant 0 : i32
    %46 = arith.cmpi ne, %45, %c0_i32_16 : i32
    scf.if %46 {
      %cst_21 = arith.constant 0.000000e+00 : f32
      %50 = vector.broadcast %cst_21 : f32 to vector<1x1xf32>
      %c0_22 = arith.constant 0 : index
      %c0_23 = arith.constant 0 : index
      %51 = vector.load %arg4[%c0_22, %c0_23] : memref<1x1xf32, #tpu.memory_space<vmem>>, vector<1x1xf32>
      tpu.vector_store %arg4[%c0_22, %c0_23], %50 {strides = array<i32>} : memref<1x1xf32, #tpu.memory_space<vmem>>, vector<1x1xf32>,
    } else {
    }
    %c0_17 = arith.constant 0 : index
    %c0_18 = arith.constant 0 : index
    %47 = vector.load %arg4[%c0_17, %c0_18] : memref<1x1xf32, #tpu.memory_space<vmem>>, vector<1x1xf32>
    %48 = arith.addf %47, %43 : vector<1x1xf32>
    %c0_19 = arith.constant 0 : index
    %c0_20 = arith.constant 0 : index
    %49 = vector.load %arg4[%c0_19, %c0_20] : memref<1x1xf32, #tpu.memory_space<vmem>>, vector<1x1xf32>
    tpu.vector_store %arg4[%c0_19, %c0_20], %48 {strides = array<i32>} : memref<1x1xf32, #tpu.memory_space<vmem>>, vector<1x1xf32>,
    return
  }
  func.func @transform_0(%arg0: i32) -> (i32, i32) {
    %c0_i32 = arith.constant 0 : i32
    %c0_i32_0 = arith.constant 0 : i32
    return %arg0, %c0_i32 : i32, i32
  }
  func.func @transform_1(%arg0: i32) -> (i32, i32) {
    %c0_i32 = arith.constant 0 : i32
    %c0_i32_0 = arith.constant 0 : i32
    return %arg0, %c0_i32 : i32, i32
  }
  func.func @transform_2(%arg0: i32) -> (i32, i32) {
    %c0_i32 = arith.constant 0 : i32
    %c0_i32_0 = arith.constant 0 : i32
    return %arg0, %c0_i32 : i32, i32
  }
  func.func @transform_3(%arg0: i32) -> (i32, i32) {
    %c0_i32 = arith.constant 0 : i32
    %c0_i32_0 = arith.constant 0 : i32
    %c0_i32_1 = arith.constant 0 : i32
    return %c0_i32, %c0_i32_0 : i32, i32
  }
}

</mosaic_0001>

<llo_original>
// kernel: tpu_custom_call.1
$region0: #{tpu_custom_call.1}
  #allocation0 [shape = 'u32[]', space=smem, size = 0x4, offset = 0x4, fixed_abs, tag = 'smem constant byte address 0x4 - core index']
  #allocation1 [shape = 'u32[144,128]{1,0:T(1,128)}', space=vmem, size = 0x12000, scoped, tag = 'internal scratch']
  %s0 = inlined_call_operand.hbm [shape: f32[8,128], index: 0, kind: input, shape index: {}]
  %s1 = inlined_call_operand.hbm [shape: f32[8,128], index: 1, kind: input, shape index: {}]
  %s2 = inlined_call_operand.hbm [shape: f32[8,128], index: 2, kind: input, shape index: {}]
  %s3 = inlined_call_operand.hbm [shape: f32[1,1], index: 3, kind: output, shape index: {}]
  %s4 = sld [smem:[#allocation0]]
  $region38: #{tpu_custom_call.1} parent=0
    _
  %s6 = ssub.s32 1, %s4
  %s7 = scalar_select 0, %s6, %s4
  $region1: #{tpu_custom_call.1} parent=0
    #allocation2 [shape = 'u8[4096]{0}', space=vmem, size = 0x1000, scoped, tag = 'input window, operand 0, single buffered']
    #allocation3 [shape = 's32[1]{0}', space=sflag, size = 0x4, scoped, tag = 'scoped memory for tpu_custom_call.1']
    #allocation4 [shape = 's32[1]{0}', space=sflag, size = 0x4, scoped, tag = 'scoped memory for tpu_custom_call.1']
    #allocation5 [shape = 'u8[4096]{0}', space=vmem, size = 0x1000, scoped, tag = 'input window, operand 1, single buffered']
    #allocation6 [shape = 's32[1]{0}', space=sflag, size = 0x4, scoped, tag = 'scoped memory for tpu_custom_call.1']
    #allocation7 [shape = 'u8[4096]{0}', space=vmem, size = 0x1000, scoped, tag = 'input window, operand 2, single buffered']
    #allocation8 [shape = 'u8[512]{0}', space=vmem, size = 0x400, scoped, tag = 'output window, operand 0, single buffered']
    %8 = vsyncpa [#allocation3], 0
    %9 = vsyncpa [#allocation6], 0
    %10 = vsyncpa [#allocation4], 0
    // Predicated region
    $region2: #{tpu_custom_call.1} parent=1 // pred_check
      _
    $region3: #{tpu_custom_call.1} parent=1 // pred_check_branch
      %12 = sbr.rel (0) target = $region5
    $region4: #{tpu_custom_call.1} parent=1 // pred_region
      %s14 = ssub.s32 128, 128
      %15 = vsyncadd [#allocation3], %s14
      %s17 = sshll.u32 [#allocation2], 4
      %s18 = int_to_ptr.vmem [resolvable:$true] %s17
      %20 = dma.hbm_to_vmem [thread:$0]  %s0, 128, %s18, [#allocation3]
    $region5: #{tpu_custom_call.1} parent=1 // pred_fallthru
      _
    // Predicated region
    $region6: #{tpu_custom_call.1} parent=1 // pred_check
      _
    $region7: #{tpu_custom_call.1} parent=1 // pred_check_branch
      %22 = sbr.rel (0) target = $region9
    $region8: #{tpu_custom_call.1} parent=1 // pred_region
      %s24 = ssub.s32 128, 128
      %25 = vsyncadd [#allocation6], %s24
      %s27 = sshll.u32 [#allocation5], 4
      %s28 = int_to_ptr.vmem [resolvable:$true] %s27
      %30 = dma.hbm_to_vmem [thread:$0]  %s1, 128, %s28, [#allocation6]
    $region9: #{tpu_custom_call.1} parent=1 // pred_fallthru
      _
    // Predicated region
    $region10: #{tpu_custom_call.1} parent=1 // pred_check
      _
    $region11: #{tpu_custom_call.1} parent=1 // pred_check_branch
      %32 = sbr.rel (0) target = $region13
    $region12: #{tpu_custom_call.1} parent=1 // pred_region
      %s34 = ssub.s32 128, 128
      %35 = vsyncadd [#allocation6], %s34
      %s37 = sshll.u32 [#allocation7], 4
      %s38 = int_to_ptr.vmem [resolvable:$true] %s37
      %40 = dma.hbm_to_vmem [thread:$0]  %s2, 128, %s38, [#allocation6]
    $region13: #{tpu_custom_call.1} parent=1 // pred_fallthru
      _
    // Predicated region
    $region14: #{tpu_custom_call.1} parent=1 // pred_check
      _
    $region15: #{tpu_custom_call.1} parent=1 // pred_check_branch
      %42 = sbr.rel (0) target = $region17
    $region16: #{tpu_custom_call.1} parent=1 // pred_region
      %43 = dma.done [#allocation3], 128
    $region17: #{tpu_custom_call.1} parent=1 // pred_fallthru
      _
    // Predicated region
    $region18: #{tpu_custom_call.1} parent=1 // pred_check
      _
    $region19: #{tpu_custom_call.1} parent=1 // pred_check_branch
      %45 = sbr.rel (0) target = $region21
    $region20: #{tpu_custom_call.1} parent=1 // pred_region
      %46 = dma.done [#allocation6], 128
    $region21: #{tpu_custom_call.1} parent=1 // pred_fallthru
      _
    // Predicated region
    $region22: #{tpu_custom_call.1} parent=1 // pred_check
      _
    $region23: #{tpu_custom_call.1} parent=1 // pred_check_branch
      %48 = sbr.rel (0) target = $region25
    $region24: #{tpu_custom_call.1} parent=1 // pred_region
      %49 = dma.done [#allocation6], 128
    $region25: #{tpu_custom_call.1} parent=1 // pred_fallthru
      _
    %v50 = vld [vmem:[#allocation2] sm:$0xff]
    %v51 = vld [vmem:[#allocation5] sm:$0xff]
    %v52 = vld [vmem:[#allocation7] sm:$0xff]
    %v53 = vmul.f32 %v50, %v50
    %54 = vadd.xlane.f32.xlu0 %v53
    %v55 = vpop.xlane.xlu0 %54
    %v56 = vmul.f32 %v51, %v51
    %57 = vadd.xlane.f32.xlu0 %v56
    %v58 = vpop.xlane.xlu0 %57
    %v59 = vmul.f32 %v52, %v52
    %60 = vadd.xlane.f32.xlu0 %v59
    %v61 = vpop.xlane.xlu0 %60
    %v62 = vmul.f32 %v50, %v51
    %63 = vadd.xlane.f32.xlu0 %v62
    %v64 = vpop.xlane.xlu0 %63
    %v65 = vmul.f32 %v50, %v52
    %66 = vadd.xlane.f32.xlu0 %v65
    %v67 = vpop.xlane.xlu0 %66
    %v68 = vmul.f32 %v55, %v58
    %v69 = vmax.f32 %v68, 1e-12
    %v70 = vrsqrt.pop %v69
    %v71 = vmul.f32 %v64, %v70
    %v72 = vmul.f32 %v55, %v61
    %v73 = vmax.f32 %v72, 1e-12
    %v74 = vrsqrt.pop %v73
    %v75 = vmul.f32 %v67, %v74
    %v76 = vsub.f32 1.0, %v71
    %v77 = vmax.f32 %v76, 0.0
    %v78 = vmul.f32 %v75, %v75
    %v79 = vmul.f32 %v77, %v77
    %v80 = vadd.f32 %v78, %v79
    %s81 = smul.u32 0, 8
    %s82 = ssub.s32 8, %s81
    %v83 = vlaneseq
    %v84 = vshrl.u32 %v83, 7
    %v85 = vstv %s82
    %vm86 = vcmp.lt.s32.totalorder %v84, %v85
    %v87 = vsel %vm86, %v80, 0.0
    %v88 = vrot.slane %v87, 4
    %v89 = vadd.f32 %v87, %v88
    %v90 = vrot.slane %v89, 2
    %v91 = vadd.f32 %v89, %v90
    %v92 = vrot.slane %v91, 1
    %v93 = vadd.f32 %v91, %v92
    %p94 = scmp.eq.s32.totalorder 0, 0
    // Predicated region
    $region26: #{tpu_custom_call.1} parent=1 // pred_check
      %p95 = pneg %p94
    $region27: #{tpu_custom_call.1} parent=1 // pred_check_branch
      %97 = sbr.rel (%p95) target = $region29
    $region28: #{tpu_custom_call.1} parent=1 // pred_region
      %vm98 = vcmask 0
      %99 = vst.msk [vmem:[#allocation8] sm:$0x1] %vm98, 0.0
    $region29: #{tpu_custom_call.1} parent=1 // pred_fallthru
      _
    %v100 = vld [vmem:[#allocation8] sm:$0x1]
    %v101 = vadd.f32 %v100, %v93
    %vm102 = vcmask 0
    %103 = vst.msk [vmem:[#allocation8] sm:$0x1] %vm102, %v101
    // Predicated region
    $region30: #{tpu_custom_call.1} parent=1 // pred_check
      _
    $region31: #{tpu_custom_call.1} parent=1 // pred_check_branch
      %105 = sbr.rel (0) target = $region33
    $region32: #{tpu_custom_call.1} parent=1 // pred_region
      %s107 = ssub.s32 16, 16
      %108 = vsyncadd [#allocation4], %s107
      %s110 = sshll.u32 [#allocation8], 4
      %s111 = int_to_ptr.vmem [resolvable:$true] %s110
      %113 = dma.vmem_to_hbm [thread:$0]  %s111, 16, %s3, [#allocation4]
    $region33: #{tpu_custom_call.1} parent=1 // pred_fallthru
      _
    // Predicated region
    $region34: #{tpu_custom_call.1} parent=1 // pred_check
      _
    $region35: #{tpu_custom_call.1} parent=1 // pred_check_branch
      %115 = sbr.rel (0) target = $region37
    $region36: #{tpu_custom_call.1} parent=1 // pred_region
      %116 = dma.done [#allocation4], 16
    $region37: #{tpu_custom_call.1} parent=1 // pred_fallthru
      _
    %117 = vsyncpa [#allocation3], 1
    %118 = vsyncpa [#allocation6], 1
    %119 = vsyncpa [#allocation4], 1

</llo_original>
